<compile_context>
chip_gen: v7x
topology: tpu7x:2x2x1
jax: 0.10.0
libtpu: 0.0.40
codegen_flags: <defaults>
</compile_context>

<pallas_src>
import functools

import jax
import jax.numpy as jnp
from jax.experimental import pallas as pl
from jax.experimental.pallas import tpu as pltpu

NPAD = 128  # lane-dense padded output width (real outputs live in columns [:3])


def _round_up(x, m):
    return (x + m - 1) // m * m


def _cdiv(a, b):
    return -(-a // b)


def lane_regressor_kernel(x_ref, w1_ref, b1_ref, w2_ref, b2_ref, o_ref):
    # x_ref:  (TILE_B, D)     f32  flattened input tile
    # w1_ref: (D, Hpad)       bf16 first linear weight (in, out), zero-padded
    # b1_ref: (1, Hpad)       f32  first bias, zero-padded
    # w2_ref: (Hpad, NPAD)    bf16 second linear weight, zero-padded
    # b2_ref: (1, NPAD)       f32  second bias, zero-padded
    # o_ref:  (TILE_B, NPAD)  bf16 lane-dense output tile
    x = x_ref[...].astype(jnp.bfloat16)      # in-kernel cast; VPU work hides behind MXU
    h = jnp.dot(x, w1_ref[...], preferred_element_type=jnp.float32)
    h = jnp.maximum(h + b1_ref[...], 0.0)    # bias + ReLU
    # TODO(synk): training-mode Dropout(p=0.3) via pltpu.prng_seed/prng_random_bits;
    # identity here (eval-mode semantics).
    out = jnp.dot(h.astype(jnp.bfloat16), w2_ref[...],
                  preferred_element_type=jnp.float32)
    out = out + b2_ref[...]
    o_ref[...] = out.astype(o_ref.dtype)


@functools.partial(jax.jit, static_argnames=("tile_b_max",))
def lane_regressor_forward(x_nchw, w1, b1, w2, b2, *, tile_b_max=2048):
    """x_nchw: (B, C, 8, 8) float32. Weights in (in, out) layout, f32."""
    B = x_nchw.shape[0]
    D, H = w1.shape

    # ---- weight layout prep (plain JAX, tiny, one-time) ---------------------
    Hpad = _round_up(H, 128)
    w1_p = jnp.pad(w1, ((0, 0), (0, Hpad - H))).astype(jnp.bfloat16)
    b1_p = jnp.pad(b1, ((0, 0), (0, Hpad - H))).astype(jnp.float32)
    w2_p = jnp.pad(w2, ((0, Hpad - H), (0, NPAD - w2.shape[1]))).astype(jnp.bfloat16)
    b2_p = jnp.pad(b2, ((0, 0), (0, NPAD - b2.shape[1]))).astype(jnp.float32)

    # x: no pad, no cast — reshape is free; Pallas handles the partial last block.
    x_flat = x_nchw.reshape(B, D)

    # ---- batch tiling --------------------------------------------------------
    tile_b = min(tile_b_max, _round_up(B, 16))   # multiple of 16 (bf16 sublane packing)
    if _cdiv(B, tile_b) < 2 and B >= 32:
        # v7x: ensure >= 2 grid steps so both TensorCores get work under "parallel".
        tile_b = _round_up(_cdiv(B, 2), 16)
    grid = (_cdiv(B, tile_b),)

    # ---- VMEM budget (resident weights + double-buffered x/out tiles) -------
    vmem_bytes = (
        2 * tile_b * D * 4          # x tiles (f32, double-buffered)
        + D * Hpad * 2              # w1 (bf16, single buffer)
        + 8 * Hpad * 4              # b1 (f32, padded to sublane tile)
        + Hpad * NPAD * 2           # w2 (bf16, single buffer)
        + 8 * NPAD * 4              # b2
        + 2 * tile_b * NPAD * 2     # out tiles (bf16, double-buffered)
    )
    # ~2x working set for compiler scratch; never above 48 MiB (v7x VMEM = 64 MiB).
    vmem_limit = int(min(48 * 1024 * 1024, max(16 * 1024 * 1024, 2 * vmem_bytes)))

    cost = pl.CostEstimate(
        flops=2 * B * (D * Hpad + Hpad * NPAD),
        transcendentals=0,
        bytes_accessed=(B * D * 4 + D * Hpad * 2 + Hpad * NPAD * 2 + B * NPAD * 2),
    )

    resident = dict(pipeline_mode=pl.Buffered(1))  # constant index map -> single buffer

    out_padded = pl.pallas_call(
        lane_regressor_kernel,
        out_shape=jax.ShapeDtypeStruct((B, NPAD), jnp.bfloat16),
        grid=grid,
        in_specs=[
            pl.BlockSpec((tile_b, D), lambda i: (i, 0)),               # x: batch-tiled
            pl.BlockSpec((D, Hpad), lambda i: (0, 0), **resident),     # w1: resident
            pl.BlockSpec((1, Hpad), lambda i: (0, 0), **resident),     # b1: resident
            pl.BlockSpec((Hpad, NPAD), lambda i: (0, 0), **resident),  # w2: resident
            pl.BlockSpec((1, NPAD), lambda i: (0, 0), **resident),     # b2: resident
        ],
        out_specs=pl.BlockSpec((tile_b, NPAD), lambda i: (i, 0)),
        compiler_params=pltpu.CompilerParams(
            dimension_semantics=("parallel",),
            vmem_limit_bytes=vmem_limit,
        ),
        cost_estimate=cost,
    )(x_flat, w1_p, b1_p, w2_p, b2_p)

    # Real outputs are the first 3 lanes; return f32 like the PyTorch module.
    return out_padded[:, :3].astype(jnp.float32)


def init_params(key, input_channels, hidden_dim):
    """Deterministic init mimicking nn.Linear's default U(-1/sqrt(fan_in), 1/sqrt(fan_in))."""
    d_in = input_channels * 8 * 8
    k1, k2, k3, k4 = jax.random.split(key, 4)
    bound1 = 1.0 / jnp.sqrt(d_in)
    bound2 = 1.0 / jnp.sqrt(hidden_dim)
    # stored as (in, out) so the kernel does x @ W directly
    w1 = jax.random.uniform(k1, (d_in, hidden_dim), jnp.float32, -bound1, bound1)
    b1 = jax.random.uniform(k2, (1, hidden_dim), jnp.float32, -bound1, bound1)
    w2 = jax.random.uniform(k3, (hidden_dim, 3), jnp.float32, -bound2, bound2)
    b2 = jax.random.uniform(k4, (1, 3), jnp.float32, -bound2, bound2)
    return w1, b1, w2, b2


if __name__ == "__main__":
    B, C, H_DIM = 2, 4, 32
    key = jax.random.PRNGKey(0)
    kx, kp = jax.random.split(key)

    x = jax.random.normal(kx, (B, C, 8, 8), dtype=jnp.float32)
    w1, b1, w2, b2 = init_params(kp, C, H_DIM)

    out = lane_regressor_forward(x, w1, b1, w2, b2)
    out = jax.block_until_ready(out)
    assert out.shape == (B, 3)

    # Reference with the same bf16 rounding points as the kernel (f32 accumulate).
    x_flat = x.reshape(B, -1)
    xb = x_flat.astype(jnp.bfloat16).astype(jnp.float32)
    w1b = w1.astype(jnp.bfloat16).astype(jnp.float32)
    w2b = w2.astype(jnp.bfloat16).astype(jnp.float32)
    h_ref = jnp.maximum(xb @ w1b + b1, 0.0).astype(jnp.bfloat16).astype(jnp.float32)
    ref = (h_ref @ w2b + b2).astype(jnp.bfloat16).astype(jnp.float32)
    assert jnp.allclose(out, ref, atol=2e-2, rtol=2e-2), (out, ref)

    # Sanity check against full-f32 math (loose: bf16 inputs/weights/output).
    ref_f32 = jnp.maximum(x_flat @ w1 + b1, 0.0) @ w2 + b2
    assert jnp.allclose(out, ref_f32, atol=5e-2, rtol=5e-2), (out, ref_f32)

    print("KERNEL_OK")
</pallas_src>

<mosaic_0001>
module attributes {stable_mosaic.version = 11 : i64} {
  func.func @lane_regressor_kernel(%arg0: i32, %arg1: memref<16x256xf32, #tpu.memory_space<vmem>>, %arg2: memref<256x128xbf16, #tpu.memory_space<vmem>>, %arg3: memref<1x128xf32, #tpu.memory_space<vmem>>, %arg4: memref<128x128xbf16, #tpu.memory_space<vmem>>, %arg5: memref<1x128xf32, #tpu.memory_space<vmem>>, %arg6: memref<16x128xbf16, #tpu.memory_space<vmem>>) attributes {dimension_semantics = [#tpu.dimension_semantics<parallel>], iteration_bounds = array<i64: 1>, scalar_prefetch = 0 : i64, scratch_operands = 0 : i64, tpu.core_type = #tpu.core_type<tc>, window_params = [{transform_indices = @transform_0, window_bounds = array<i64: 16, 256>}, {pipeline_mode = #tpu.pipeline_mode<synchronous>, transform_indices = @transform_1, window_bounds = array<i64: 256, 128>}, {pipeline_mode = #tpu.pipeline_mode<synchronous>, transform_indices = @transform_2, window_bounds = array<i64: 1, 128>}, {pipeline_mode = #tpu.pipeline_mode<synchronous>, transform_indices = @transform_3, window_bounds = array<i64: 128, 128>}, {pipeline_mode = #tpu.pipeline_mode<synchronous>, transform_indices = @transform_4, window_bounds = array<i64: 1, 128>}, {transform_indices = @transform_5, window_bounds = array<i64: 16, 128>}]} {
    %c0 = arith.constant 0 : index
    %c0_0 = arith.constant 0 : index
    %0 = vector.load %arg1[%c0, %c0_0] : memref<16x256xf32, #tpu.memory_space<vmem>>, vector<16x256xf32>
    %1 = arith.truncf %0 : vector<16x256xf32> to vector<16x256xbf16>
    %c0_1 = arith.constant 0 : index
    %c0_2 = arith.constant 0 : index
    %2 = vector.load %arg2[%c0_1, %c0_2] : memref<256x128xbf16, #tpu.memory_space<vmem>>, vector<256x128xbf16>
    %cst = arith.constant dense<0.000000e+00> : vector<16x128xf32>
    %3 = tpu.matmul %1, %2, %cst {dimension_numbers = #tpu.dot_dimension_numbers<[1], [0], [0], [1], [0, 0, 1, 1], [], []>} : vector<16x256xbf16>, vector<256x128xbf16>, vector<16x128xf32> -> vector<16x128xf32>
    %c0_3 = arith.constant 0 : index
    %c0_4 = arith.constant 0 : index
    %4 = vector.load %arg3[%c0_3, %c0_4] : memref<1x128xf32, #tpu.memory_space<vmem>>, vector<1x128xf32>
    %5 = vector.broadcast %4 : vector<1x128xf32> to vector<16x128xf32>
    %6 = arith.addf %3, %5 : vector<16x128xf32>
    %cst_5 = arith.constant 0.000000e+00 : f32
    %7 = vector.broadcast %cst_5 : f32 to vector<16x128xf32>
    %8 = arith.maximumf %6, %7 : vector<16x128xf32>
    %9 = arith.truncf %8 : vector<16x128xf32> to vector<16x128xbf16>
    %c0_6 = arith.constant 0 : index
    %c0_7 = arith.constant 0 : index
    %10 = vector.load %arg4[%c0_6, %c0_7] : memref<128x128xbf16, #tpu.memory_space<vmem>>, vector<128x128xbf16>
    %cst_8 = arith.constant dense<0.000000e+00> : vector<16x128xf32>
    %11 = tpu.matmul %9, %10, %cst_8 {dimension_numbers = #tpu.dot_dimension_numbers<[1], [0], [0], [1], [0, 0, 1, 1], [], []>} : vector<16x128xbf16>, vector<128x128xbf16>, vector<16x128xf32> -> vector<16x128xf32>
    %c0_9 = arith.constant 0 : index
    %c0_10 = arith.constant 0 : index
    %12 = vector.load %arg5[%c0_9, %c0_10] : memref<1x128xf32, #tpu.memory_space<vmem>>, vector<1x128xf32>
    %13 = vector.broadcast %12 : vector<1x128xf32> to vector<16x128xf32>
    %14 = arith.addf %11, %13 : vector<16x128xf32>
    %15 = arith.truncf %14 : vector<16x128xf32> to vector<16x128xbf16>
    %c0_11 = arith.constant 0 : index
    %c0_12 = arith.constant 0 : index
    %16 = vector.load %arg6[%c0_11, %c0_12] : memref<16x128xbf16, #tpu.memory_space<vmem>>, vector<16x128xbf16>
    tpu.vector_store %arg6[%c0_11, %c0_12], %15 {strides = array<i32>} : memref<16x128xbf16, #tpu.memory_space<vmem>>, vector<16x128xbf16>,
    return
  }
  func.func @transform_0(%arg0: i32) -> (i32, i32) {
    %c0_i32 = arith.constant 0 : i32
    %c0_i32_0 = arith.constant 0 : i32
    return %arg0, %c0_i32 : i32, i32
  }
  func.func @transform_1(%arg0: i32) -> (i32, i32) {
    %c0_i32 = arith.constant 0 : i32
    %c0_i32_0 = arith.constant 0 : i32
    %c0_i32_1 = arith.constant 0 : i32
    return %c0_i32, %c0_i32_0 : i32, i32
  }
  func.func @transform_2(%arg0: i32) -> (i32, i32) {
    %c0_i32 = arith.constant 0 : i32
    %c0_i32_0 = arith.constant 0 : i32
    %c0_i32_1 = arith.constant 0 : i32
    return %c0_i32, %c0_i32_0 : i32, i32
  }
  func.func @transform_3(%arg0: i32) -> (i32, i32) {
    %c0_i32 = arith.constant 0 : i32
    %c0_i32_0 = arith.constant 0 : i32
    %c0_i32_1 = arith.constant 0 : i32
    return %c0_i32, %c0_i32_0 : i32, i32
  }
  func.func @transform_4(%arg0: i32) -> (i32, i32) {
    %c0_i32 = arith.constant 0 : i32
    %c0_i32_0 = arith.constant 0 : i32
    %c0_i32_1 = arith.constant 0 : i32
    return %c0_i32, %c0_i32_0 : i32, i32
  }
  func.func @transform_5(%arg0: i32) -> (i32, i32) {
    %c0_i32 = arith.constant 0 : i32
    %c0_i32_0 = arith.constant 0 : i32
    return %arg0, %c0_i32 : i32, i32
  }
}

</mosaic_0001>

<llo_original>
// kernel: lane_regressor_forward.1
$region0: #{lane_regressor_forward.1}
  #allocation0 [shape = 'u32[]', space=smem, size = 0x4, offset = 0x4, fixed_abs, tag = 'smem constant byte address 0x4 - core index']
  #allocation1 [shape = 'u32[144,128]{1,0:T(1,128)}', space=vmem, size = 0x12000, scoped, tag = 'internal scratch']
  %s0 = inlined_call_operand.vmem [shape: f32[2,256], index: 0, kind: input, shape index: {}]
  %s1 = inlined_call_operand.vmem [shape: bf16[256,128], index: 1, kind: input, shape index: {}]
  %s2 = inlined_call_operand.vmem [shape: f32[1,128], index: 2, kind: input, shape index: {}]
  %s3 = inlined_call_operand.vmem [shape: bf16[128,128], index: 3, kind: input, shape index: {}]
  %s4 = inlined_call_operand.vmem [shape: f32[1,128], index: 4, kind: input, shape index: {}]
  %s5 = inlined_call_operand.vmem [shape: bf16[2,128], index: 5, kind: output, shape index: {}]
  %s6 = sld [smem:[#allocation0]]
  $region60: #{lane_regressor_forward.1} parent=0
    _
  %s8 = ssub.s32 1, %s6
  %s9 = scalar_select 0, %s8, %s6
  $region1: #{lane_regressor_forward.1} parent=0
    #allocation2 [shape = 'u8[4096]{0}', space=vmem, size = 0x1000, scoped, tag = 'output window, operand 0, single buffered']
    // Predicated region
    $region2: #{lane_regressor_forward.1} parent=1 // pred_check
      _
    $region3: #{lane_regressor_forward.1} parent=1 // pred_check_branch
      %11 = sbr.rel (0) target = $region5
    $region4: #{lane_regressor_forward.1} parent=1 // pred_region
      _
    $region5: #{lane_regressor_forward.1} parent=1 // pred_fallthru
      _
    // Predicated region
    $region6: #{lane_regressor_forward.1} parent=1 // pred_check
      _
    $region7: #{lane_regressor_forward.1} parent=1 // pred_check_branch
      %13 = sbr.rel (0) target = $region9
    $region8: #{lane_regressor_forward.1} parent=1 // pred_region
      _
    $region9: #{lane_regressor_forward.1} parent=1 // pred_fallthru
      _
    // Predicated region
    $region10: #{lane_regressor_forward.1} parent=1 // pred_check
      _
    $region11: #{lane_regressor_forward.1} parent=1 // pred_check_branch
      %15 = sbr.rel (0) target = $region13
    $region12: #{lane_regressor_forward.1} parent=1 // pred_region
      _
    $region13: #{lane_regressor_forward.1} parent=1 // pred_fallthru
      _
    // Predicated region
    $region14: #{lane_regressor_forward.1} parent=1 // pred_check
      _
    $region15: #{lane_regressor_forward.1} parent=1 // pred_check_branch
      %17 = sbr.rel (0) target = $region17
    $region16: #{lane_regressor_forward.1} parent=1 // pred_region
      _
    $region17: #{lane_regressor_forward.1} parent=1 // pred_fallthru
      _
    // Predicated region
    $region18: #{lane_regressor_forward.1} parent=1 // pred_check
      _
    $region19: #{lane_regressor_forward.1} parent=1 // pred_check_branch
      %19 = sbr.rel (0) target = $region21
    $region20: #{lane_regressor_forward.1} parent=1 // pred_region
      _
    $region21: #{lane_regressor_forward.1} parent=1 // pred_fallthru
      _
    %v21 = vld [vmem:[%s0] sm:$0xf]
    %v22 = vld [vmem:[%s0 + $0x4] sm:$0xf]
    %v23 = vld [vmem:[%s0 + $0x8] sm:$0xf]
    %v24 = vld [vmem:[%s0 + $0xc] sm:$0xf]
    %v25 = vld [vmem:[%s0 + $0x10] sm:$0xf]
    %v26 = vld [vmem:[%s0 + $0x14] sm:$0xf]
    %v27 = vld [vmem:[%s0 + $0x18] sm:$0xf]
    %v28 = vld [vmem:[%s0 + $0x1c] sm:$0xf]
    %v37 = vcombine.low %v21, %v22
    %v38 = vcombine.low %v23, %v24
    %v40 = vunpack.c.l.s4 1983009808
    %v41 = vunpack.c.0.s8 %v40
    %v42 = vlaneseq
    %v43 = vshrl.u32 %v42, 7
    %v44 = vsub.s32 %v41, %v43
    %v45 = vrot.slane %v37, %v44
    %v47 = vunpack.c.l.s4 1983009808
    %v48 = vunpack.c.0.s8 %v47
    %v49 = vlaneseq
    %v50 = vshrl.u32 %v49, 7
    %v51 = vsub.s32 %v48, %v50
    %v52 = vrot.slane %v38, %v51
    %v53 = vcombine.low %v45, %v52
    %v54 = vcombine.high %v45, %v52
    %v55 = vcombine.low %v25, %v26
    %v56 = vcombine.low %v27, %v28
    %v58 = vunpack.c.l.s4 1983009808
    %v59 = vunpack.c.0.s8 %v58
    %v60 = vlaneseq
    %v61 = vshrl.u32 %v60, 7
    %v62 = vsub.s32 %v59, %v61
    %v63 = vrot.slane %v55, %v62
    %v65 = vunpack.c.l.s4 1983009808
    %v66 = vunpack.c.0.s8 %v65
    %v67 = vlaneseq
    %v68 = vshrl.u32 %v67, 7
    %v69 = vsub.s32 %v66, %v68
    %v70 = vrot.slane %v56, %v69
    %v71 = vcombine.low %v63, %v70
    %v72 = vcombine.high %v63, %v70
    %v77 = vpack.c.bf16 %v71, %v53
    %v78 = vpack.c.bf16 %v72, %v54
    %v79 = vld [vmem:[%s1] sm:$0xf]
    %v80 = vld [vmem:[%s1 + $0x4] sm:$0xf]
    %v81 = vld [vmem:[%s1 + $0x8] sm:$0xf]
    %v82 = vld [vmem:[%s1 + $0xc] sm:$0xf]
    %v83 = vld [vmem:[%s1 + $0x10] sm:$0xf]
    %v84 = vld [vmem:[%s1 + $0x14] sm:$0xf]
    %v85 = vld [vmem:[%s1 + $0x18] sm:$0xf]
    %v86 = vld [vmem:[%s1 + $0x1c] sm:$0xf]
    %v87 = vld [vmem:[%s1 + $0x20] sm:$0xf]
    %v88 = vld [vmem:[%s1 + $0x24] sm:$0xf]
    %v89 = vld [vmem:[%s1 + $0x28] sm:$0xf]
    %v90 = vld [vmem:[%s1 + $0x2c] sm:$0xf]
    %v91 = vld [vmem:[%s1 + $0x30] sm:$0xf]
    %v92 = vld [vmem:[%s1 + $0x34] sm:$0xf]
    %v93 = vld [vmem:[%s1 + $0x38] sm:$0xf]
    %v94 = vld [vmem:[%s1 + $0x3c] sm:$0xf]
    %v95 = vld [vmem:[%s1 + $0x40] sm:$0xf]
    %v96 = vld [vmem:[%s1 + $0x44] sm:$0xf]
    %v97 = vld [vmem:[%s1 + $0x48] sm:$0xf]
    %v98 = vld [vmem:[%s1 + $0x4c] sm:$0xf]
    %v99 = vld [vmem:[%s1 + $0x50] sm:$0xf]
    %v100 = vld [vmem:[%s1 + $0x54] sm:$0xf]
    %v101 = vld [vmem:[%s1 + $0x58] sm:$0xf]
    %v102 = vld [vmem:[%s1 + $0x5c] sm:$0xf]
    %v103 = vld [vmem:[%s1 + $0x60] sm:$0xf]
    %v104 = vld [vmem:[%s1 + $0x64] sm:$0xf]
    %v105 = vld [vmem:[%s1 + $0x68] sm:$0xf]
    %v106 = vld [vmem:[%s1 + $0x6c] sm:$0xf]
    %v107 = vld [vmem:[%s1 + $0x70] sm:$0xf]
    %v108 = vld [vmem:[%s1 + $0x74] sm:$0xf]
    %v109 = vld [vmem:[%s1 + $0x78] sm:$0xf]
    %v110 = vld [vmem:[%s1 + $0x7c] sm:$0xf]
    %v111 = vld [vmem:[%s2] sm:$0x1]
    %v113 = vlaneseq
    %v114 = vshrl.u32 %v113, 7
    %v115 = vsub.s32 0, %v114
    %v116 = vrot.slane %v111, %v115
    %v150 = vunpack.c.l.b16 %v79
    %v151 = vunpack.c.l.b16 %v80
    %v152 = vunpack.c.l.b16 %v81
    %v153 = vunpack.c.l.b16 %v82
    %v154 = vunpack.c.l.b16 %v83
    %v155 = vunpack.c.l.b16 %v84
    %v156 = vunpack.c.l.b16 %v85
    %v157 = vunpack.c.l.b16 %v86
    %v158 = vunpack.c.l.b16 %v87
    %v159 = vunpack.c.l.b16 %v88
    %v160 = vunpack.c.l.b16 %v89
    %v161 = vunpack.c.l.b16 %v90
    %v162 = vunpack.c.l.b16 %v91
    %v163 = vunpack.c.l.b16 %v92
    %v164 = vunpack.c.l.b16 %v93
    %v165 = vunpack.c.l.b16 %v94
    %v166 = vunpack.c.l.b16 %v95
    %v167 = vunpack.c.l.b16 %v96
    %v168 = vunpack.c.l.b16 %v97
    %v169 = vunpack.c.l.b16 %v98
    %v170 = vunpack.c.l.b16 %v99
    %v171 = vunpack.c.l.b16 %v100
    %v172 = vunpack.c.l.b16 %v101
    %v173 = vunpack.c.l.b16 %v102
    %v174 = vunpack.c.l.b16 %v103
    %v175 = vunpack.c.l.b16 %v104
    %v176 = vunpack.c.l.b16 %v105
    %v177 = vunpack.c.l.b16 %v106
    %v178 = vunpack.c.l.b16 %v107
    %v179 = vunpack.c.l.b16 %v108
    %v180 = vunpack.c.l.b16 %v109
    %v181 = vunpack.c.l.b16 %v110
    %v182 = vpack.c.b16 %v151, %v150
    %v183 = vpack.c.b16 %v153, %v152
    %v184 = vpack.c.b16 %v155, %v154
    %v185 = vpack.c.b16 %v157, %v156
    %v186 = vpack.c.b16 %v159, %v158
    %v187 = vpack.c.b16 %v161, %v160
    %v188 = vpack.c.b16 %v163, %v162
    %v189 = vpack.c.b16 %v165, %v164
    %v190 = vpack.c.b16 %v167, %v166
    %v191 = vpack.c.b16 %v169, %v168
    %v192 = vpack.c.b16 %v171, %v170
    %v193 = vpack.c.b16 %v173, %v172
    %v194 = vpack.c.b16 %v175, %v174
    %v195 = vpack.c.b16 %v177, %v176
    %v196 = vpack.c.b16 %v179, %v178
    %v197 = vpack.c.b16 %v181, %v180
    %214 = vmatprep.subr.bf16.mxu0 0
    %215 = vmatpush1.bf16.msra.mxu0 %v182
    %216 = vmatprep.subr.bf16.mxu0 0
    %217 = vmatpush1.bf16.msra.mxu0 %v183
    %218 = vmatprep.subr.bf16.mxu0 0
    %219 = vmatpush1.bf16.msra.mxu0 %v184
    %220 = vmatprep.subr.bf16.mxu0 0
    %221 = vmatpush1.bf16.msra.mxu0 %v185
    %222 = vmatprep.subr.bf16.mxu0 0
    %223 = vmatpush1.bf16.msra.mxu0 %v186
    %224 = vmatprep.subr.bf16.mxu0 0
    %225 = vmatpush1.bf16.msra.mxu0 %v187
    %226 = vmatprep.subr.bf16.mxu0 0
    %227 = vmatpush1.bf16.msra.mxu0 %v188
    %228 = vmatprep.subr.bf16.mxu0 0
    %229 = vmatpush1.bf16.msra.mxu0 %v189
    %230 = vmatprep.subr.bf16.mxu0 0
    %231 = vmatpush1.bf16.msra.mxu0 %v190
    %232 = vmatprep.subr.bf16.mxu0 0
    %233 = vmatpush1.bf16.msra.mxu0 %v191
    %234 = vmatprep.subr.bf16.mxu0 0
    %235 = vmatpush1.bf16.msra.mxu0 %v192
    %236 = vmatprep.subr.bf16.mxu0 0
    %237 = vmatpush1.bf16.msra.mxu0 %v193
    %238 = vmatprep.subr.bf16.mxu0 0
    %239 = vmatpush1.bf16.msra.mxu0 %v194
    %240 = vmatprep.subr.bf16.mxu0 0
    %241 = vmatpush1.bf16.msra.mxu0 %v195
    %242 = vmatprep.subr.bf16.mxu0 0
    %243 = vmatpush1.bf16.msra.mxu0 %v196
    %244 = vmatprep.subr.bf16.mxu0 0
    %245 = vmatpush1.bf16.msra.mxu0 %v197
    %246 = vmatprep.mubr.bf16.mxu0 %v78
    %247 = vmatmul.mubr.bf16.gmra.mrb[0].mxu0 %v77
    %v248 = vpop.f32.mrb[0].mxu0
    %v249 = vadd.f32 %v116, %v248
    %v250 = vpop.f32.mrb[0].mxu0
    %v251 = vpop.f32.mrb[0].mxu0
    %v252 = vadd.f32 %v116, %v251
    %v253 = vpop.f32.mrb[0].mxu0
    %254 = vdwg.mxu0
    %v255 = vmax.f32 %v249, 0.0
    %v256 = vmax.f32 %v252, 0.0
    %v257 = vpack.c.bf16 %v256, %v255
    %v258 = vld [vmem:[%s3] sm:$0xf]
    %v259 = vld [vmem:[%s3 + $0x4] sm:$0xf]
    %v260 = vld [vmem:[%s3 + $0x8] sm:$0xf]
    %v261 = vld [vmem:[%s3 + $0xc] sm:$0xf]
    %v262 = vld [vmem:[%s3 + $0x10] sm:$0xf]
    %v263 = vld [vmem:[%s3 + $0x14] sm:$0xf]
    %v264 = vld [vmem:[%s3 + $0x18] sm:$0xf]
    %v265 = vld [vmem:[%s3 + $0x1c] sm:$0xf]
    %v266 = vld [vmem:[%s3 + $0x20] sm:$0xf]
    %v267 = vld [vmem:[%s3 + $0x24] sm:$0xf]
    %v268 = vld [vmem:[%s3 + $0x28] sm:$0xf]
    %v269 = vld [vmem:[%s3 + $0x2c] sm:$0xf]
    %v270 = vld [vmem:[%s3 + $0x30] sm:$0xf]
    %v271 = vld [vmem:[%s3 + $0x34] sm:$0xf]
    %v272 = vld [vmem:[%s3 + $0x38] sm:$0xf]
    %v273 = vld [vmem:[%s3 + $0x3c] sm:$0xf]
    %v274 = vld [vmem:[%s4] sm:$0x1]
    %v276 = vlaneseq
    %v277 = vshrl.u32 %v276, 7
    %v278 = vsub.s32 0, %v277
    %v279 = vrot.slane %v274, %v278
    %v297 = vunpack.c.l.b16 %v258
    %v298 = vunpack.c.l.b16 %v259
    %v299 = vunpack.c.l.b16 %v260
    %v300 = vunpack.c.l.b16 %v261
    %v301 = vunpack.c.l.b16 %v262
    %v302 = vunpack.c.l.b16 %v263
    %v303 = vunpack.c.l.b16 %v264
    %v304 = vunpack.c.l.b16 %v265
    %v305 = vunpack.c.l.b16 %v266
    %v306 = vunpack.c.l.b16 %v267
    %v307 = vunpack.c.l.b16 %v268
    %v308 = vunpack.c.l.b16 %v269
    %v309 = vunpack.c.l.b16 %v270
    %v310 = vunpack.c.l.b16 %v271
    %v311 = vunpack.c.l.b16 %v272
    %v312 = vunpack.c.l.b16 %v273
    %v313 = vpack.c.b16 %v298, %v297
    %v314 = vpack.c.b16 %v300, %v299
    %v315 = vpack.c.b16 %v302, %v301
    %v316 = vpack.c.b16 %v304, %v303
    %v317 = vpack.c.b16 %v306, %v305
    %v318 = vpack.c.b16 %v308, %v307
    %v319 = vpack.c.b16 %v310, %v309
    %v320 = vpack.c.b16 %v312, %v311
    %329 = vmatprep.subr.bf16.mxu0 0
    %330 = vmatpush1.bf16.msra.mxu0 %v313
    %331 = vmatprep.subr.bf16.mxu0 0
    %332 = vmatpush1.bf16.msra.mxu0 %v314
    %333 = vmatprep.subr.bf16.mxu0 0
    %334 = vmatpush1.bf16.msra.mxu0 %v315
    %335 = vmatprep.subr.bf16.mxu0 0
    %336 = vmatpush1.bf16.msra.mxu0 %v316
    %337 = vmatprep.subr.bf16.mxu0 0
    %338 = vmatpush1.bf16.msra.mxu0 %v317
    %339 = vmatprep.subr.bf16.mxu0 0
    %340 = vmatpush1.bf16.msra.mxu0 %v318
    %341 = vmatprep.subr.bf16.mxu0 0
    %342 = vmatpush1.bf16.msra.mxu0 %v319
    %343 = vmatprep.subr.bf16.mxu0 0
    %344 = vmatpush1.bf16.msra.mxu0 %v320
    %345 = vmatprep.subr.bf16.mxu0 0
    %346 = vmatpush1.bf16.msra.mxu0 0
    %347 = vmatprep.subr.bf16.mxu0 0
    %348 = vmatpush1.bf16.msra.mxu0 0
    %349 = vmatprep.subr.bf16.mxu0 0
    %350 = vmatpush1.bf16.msra.mxu0 0
    %351 = vmatprep.subr.bf16.mxu0 0
    %352 = vmatpush1.bf16.msra.mxu0 0
    %353 = vmatprep.subr.bf16.mxu0 0
    %354 = vmatpush1.bf16.msra.mxu0 0
    %355 = vmatprep.subr.bf16.mxu0 0
    %356 = vmatpush1.bf16.msra.mxu0 0
    %357 = vmatprep.subr.bf16.mxu0 0
    %358 = vmatpush1.bf16.msra.mxu0 0
    %359 = vmatprep.subr.bf16.mxu0 0
    %360 = vmatpush1.bf16.msra.mxu0 0
    %361 = vmatprep.mubr.bf16.mxu0 0
    %362 = vmatmul.mubr.bf16.gmra.mrb[0].mxu0 %v257
    %v363 = vpop.f32.mrb[0].mxu0
    %v364 = vadd.f32 %v279, %v363
    %v365 = vpop.f32.mrb[0].mxu0
    %v366 = vpop.f32.mrb[0].mxu0
    %v367 = vadd.f32 %v279, %v366
    %v368 = vpop.f32.mrb[0].mxu0
    %369 = vdwg.mxu0
    %v370 = vpack.c.bf16 %v367, %v364
    %v372 = vcombine.high %v370, %v370
    %v374 = vunpack.c.l.s4 1966171168
    %v375 = vunpack.c.0.s8 %v374
    %v376 = vlaneseq
    %v377 = vshrl.u32 %v376, 7
    %v378 = vsub.s32 %v375, %v377
    %v379 = vrot.slane %v370, %v378
    %v381 = vunpack.c.l.s4 1966171168
    %v382 = vunpack.c.0.s8 %v381
    %v383 = vlaneseq
    %v384 = vshrl.u32 %v383, 7
    %v385 = vsub.s32 %v382, %v384
    %v386 = vrot.slane %v372, %v385
    %v387 = vcombine.high %v379, %v379
    %v388 = vcombine.high %v386, %v386
    %v390 = vunpack.c.l.s4 1966171168
    %v391 = vunpack.c.0.s8 %v390
    %v392 = vlaneseq
    %v393 = vshrl.u32 %v392, 7
    %v394 = vsub.s32 %v391, %v393
    %v395 = vrot.slane %v379, %v394
    %v397 = vunpack.c.l.s4 1966171168
    %v398 = vunpack.c.0.s8 %v397
    %v399 = vlaneseq
    %v400 = vshrl.u32 %v399, 7
    %v401 = vsub.s32 %v398, %v400
    %v402 = vrot.slane %v386, %v401
    %v404 = vunpack.c.l.s4 1966171168
    %v405 = vunpack.c.0.s8 %v404
    %v406 = vlaneseq
    %v407 = vshrl.u32 %v406, 7
    %v408 = vsub.s32 %v405, %v407
    %v409 = vrot.slane %v387, %v408
    %v411 = vunpack.c.l.s4 1966171168
    %v412 = vunpack.c.0.s8 %v411
    %v413 = vlaneseq
    %v414 = vshrl.u32 %v413, 7
    %v415 = vsub.s32 %v412, %v414
    %v416 = vrot.slane %v388, %v415
    %v417 = vcombine.high %v395, %v395
    %v418 = vcombine.high %v402, %v402
    %v419 = vcombine.high %v409, %v409
    %v420 = vcombine.high %v416, %v416
    %429 = vst [vmem:[#allocation2] sm:$0x1] %v395
    %430 = vst [vmem:[#allocation2 + $0x1] sm:$0x1] %v409
    %431 = vst [vmem:[#allocation2 + $0x2] sm:$0x1] %v417
    %432 = vst [vmem:[#allocation2 + $0x3] sm:$0x1] %v419
    %433 = vst [vmem:[#allocation2 + $0x4] sm:$0x1] %v402
    %434 = vst [vmem:[#allocation2 + $0x5] sm:$0x1] %v416
    %435 = vst [vmem:[#allocation2 + $0x6] sm:$0x1] %v418
    %436 = vst [vmem:[#allocation2 + $0x7] sm:$0x1] %v420
    // Predicated region
    $region22: #{lane_regressor_forward.1} parent=1 // pred_check
      _
    $region23: #{lane_regressor_forward.1} parent=1 // pred_check_branch
      %438 = sbr.rel (0) target = $region25
    $region24: #{lane_regressor_forward.1} parent=1 // pred_region
      // Predicated region
      $region26: #{lane_regressor_forward.1} parent=24 // pred_check
        _
      $region27: #{lane_regressor_forward.1} parent=24 // pred_check_branch
        %440 = sbr.rel (0) target = $region29
      $region28: #{lane_regressor_forward.1} parent=24 // pred_region
        // Predicated region
        $region30: #{lane_regressor_forward.1} parent=28 // pred_check
          _
        $region31: #{lane_regressor_forward.1} parent=28 // pred_check_branch
          %442 = sbr.rel target = $region33
        $region32: #{lane_regressor_forward.1} parent=28 // pred_region
          // Predicated region
          $region45: #{lane_regressor_forward.1} parent=32 // pred_check
            _
          $region46: #{lane_regressor_forward.1} parent=32 // pred_check_branch
            %457 = sbr.rel (0) target = $region48
          $region47: #{lane_regressor_forward.1} parent=32 // pred_region
            loop: start=0, step=1, limit=1
            $region49: #{lane_regressor_forward.1} parent=47 // loop_pre_header
              _
            $region50: #{lane_regressor_forward.1} parent=47 // loop_header
              %s460 = sphi 0, %s464
              %p461 = scmp.ge.s32.totalorder %s460, 1
              %s465 = sphi [#allocation2], [#allocation2]
              %s466 = sphi %s5, %s5
            $region51: #{lane_regressor_forward.1} parent=47 // loop_header_branch
              %463 = sbr.rel (%p461) target = $region55
            $region52: #{lane_regressor_forward.1} parent=47 // loop_body
              %v467 = vld [vmem:[%s465] sm:$0x1]
              %468 = vst [vmem:[%s466] sm:$0x1] %v467
            $region53: #{lane_regressor_forward.1} parent=47 // loop_footer
              %s464 = sadd.s32 1, %s460
            $region54: #{lane_regressor_forward.1} parent=47 // loop_footer_branch
              %459 = sbr.rel target = $region50
            $region55: #{lane_regressor_forward.1} parent=47 // loop_exit
              _
          $region48: #{lane_regressor_forward.1} parent=32 // pred_fallthru
            _
        $region33: #{lane_regressor_forward.1} parent=28 // pred_fallthru
          _
        // Predicated region
        $region34: #{lane_regressor_forward.1} parent=28 // pred_check
          _
        $region35: #{lane_regressor_forward.1} parent=28 // pred_check_branch
          %444 = sbr.rel (0) target = $region37
        $region36: #{lane_regressor_forward.1} parent=28 // pred_region
          loop: start=0, step=1, limit=1
          $region38: #{lane_regressor_forward.1} parent=36 // loop_pre_header
            _
          $region39: #{lane_regressor_forward.1} parent=36 // loop_header
            %s447 = sphi 0, %s451
            %p448 = scmp.ge.s32.totalorder %s447, 1
            %s452 = sphi [#allocation2], [#allocation2]
            %s453 = sphi %s5, %s5
          $region40: #{lane_regressor_forward.1} parent=36 // loop_header_branch
            %450 = sbr.rel (%p448) target = $region44
          $region41: #{lane_regressor_forward.1} parent=36 // loop_body
            %v454 = vld [vmem:[%s452] sm:$0x1]
            %455 = vst [vmem:[%s453] sm:$0x1] %v454
          $region42: #{lane_regressor_forward.1} parent=36 // loop_footer
            %s451 = sadd.s32 1, %s447
          $region43: #{lane_regressor_forward.1} parent=36 // loop_footer_branch
            %446 = sbr.rel target = $region39
          $region44: #{lane_regressor_forward.1} parent=36 // loop_exit
            _
        $region37: #{lane_regressor_forward.1} parent=28 // pred_fallthru
          _
      $region29: #{lane_regressor_forward.1} parent=24 // pred_fallthru
        _
      %469 = vnop
    $region25: #{lane_regressor_forward.1} parent=1 // pred_fallthru
      _
    // Predicated region
    $region56: #{lane_regressor_forward.1} parent=1 // pred_check
      _
    $region57: #{lane_regressor_forward.1} parent=1 // pred_check_branch
      %471 = sbr.rel (0) target = $region59
    $region58: #{lane_regressor_forward.1} parent=1 // pred_region
      _
    $region59: #{lane_regressor_forward.1} parent=1 // pred_fallthru
      _

</llo_original>
